<compile_context>
chip_gen: v6e
topology: v6e:2x2x1
jax: 0.10.0
libtpu: 0.0.40
codegen_flags: <defaults>
</compile_context>

<pallas_src>
import functools

import jax
import jax.numpy as jnp
from jax.experimental import pallas as pl
from jax.experimental.pallas import tpu as pltpu

LANE = 128           # feature dims padded to multiples of the 128-lane axis
DST_TILE_MAX = 512   # output rows computed per grid step
SRC_TILE_MAX = 2048  # source-node (reduction) tile
DST_ALIGN = 32       # int8 adjacency packs 32 rows per sublane group


def _round_up(x, m):
    return ((x + m - 1) // m) * m


def _pad2(a, rows, cols):
    return jnp.pad(a, ((0, rows - a.shape[0]), (0, cols - a.shape[1])))


def _choose_dst_tile(n_dst):
    n_pad = _round_up(n_dst, DST_ALIGN)
    tile = min(DST_TILE_MAX, n_pad)
    # v7x megacore: the dst axis is the only "parallel" grid axis; when a single tile would
    # cover the whole dst range but there is enough work, halve it so >= 2 blocks exist.
    if n_pad // tile < 2 and n_pad >= 256:
        tile = _round_up((n_pad + 1) // 2, DST_ALIGN)
    return tile


# ----------------------------------------------------------------------------
# Kernel B ("xw_first", used when f_in >= f_out):
#   out[d] = relu( sum_r dsc_r[d] * ( sum_s A01[r, d_tile, s_tile] @ Z[r, s_tile] ) + b_sum )
#   with Z_r = D_src_r^{-1/2} (X @ W_r) precomputed in the wrapper (bf16).
# ----------------------------------------------------------------------------
def _a_xw_kernel(adj_ref, z_ref, dsc_ref, b_ref, o_ref, acc_ref, *, apply_relu):
    r = pl.program_id(1)
    s = pl.program_id(2)

    @pl.when(jnp.logical_and(r == 0, s == 0))
    def _():
        o_ref[...] = jnp.zeros_like(o_ref)

    @pl.when(s == 0)
    def _():
        acc_ref[...] = jnp.zeros_like(acc_ref)

    # int8 0/1 adjacency -> bf16 (exact); MXU matmul with f32 accumulation.
    a = adj_ref[...].astype(jnp.bfloat16)
    acc_ref[...] += jnp.dot(a, z_ref[...], preferred_element_type=jnp.float32)

    @pl.when(s == pl.num_programs(2) - 1)
    def _():
        # per-relation dst-degree normalization, added into the resident output block
        o_ref[...] += acc_ref[...] * dsc_ref[...]

    # NOTE: the epilogue below relies on the relation (axis 1) and src-tile (axis 2) grid axes
    # being sequential reduction axes ("arbitrary") that iterate *after* each dst tile is chosen;
    # do not mark them "parallel" or reorder the grid without moving this epilogue.
    @pl.when(jnp.logical_and(r == pl.num_programs(1) - 1,
                             s == pl.num_programs(2) - 1))
    def _():
        out = o_ref[...] + b_ref[...]
        if apply_relu:
            out = jnp.maximum(out, 0.0)
        o_ref[...] = out


def hetero_layer_a_xw(adj_stack, z_stack, dst_scale, b_sum, *, apply_relu, dst_tile, src_tile):
    """adj_stack: (R, Ndp, Nsp) int8; z_stack: (R, Nsp, Fop) bf16;
       dst_scale: (R, Ndp, 1) f32; b_sum: (1, Fop) f32."""
    R, ndp, nsp = adj_stack.shape
    fop = z_stack.shape[-1]
    grid = (ndp // dst_tile, R, nsp // src_tile)
    kernel = functools.partial(_a_xw_kernel, apply_relu=apply_relu)
    return pl.pallas_call(
        kernel,
        out_shape=jax.ShapeDtypeStruct((ndp, fop), jnp.float32),
        grid_spec=pltpu.PrefetchScalarGridSpec(
            num_scalar_prefetch=0,
            grid=grid,
            in_specs=[
                pl.BlockSpec((None, dst_tile, src_tile), lambda d, r, s: (r, d, s)),
                pl.BlockSpec((None, src_tile, fop), lambda d, r, s: (r, s, 0)),
                pl.BlockSpec((None, dst_tile, 1), lambda d, r, s: (r, d, 0)),
                pl.BlockSpec((1, fop), lambda d, r, s: (0, 0)),
            ],
            out_specs=pl.BlockSpec((dst_tile, fop), lambda d, r, s: (d, 0)),
            scratch_shapes=[pltpu.VMEM((dst_tile, fop), jnp.float32)],
        ),
        compiler_params=pltpu.CompilerParams(
            dimension_semantics=("parallel", "arbitrary", "arbitrary")),
    )(adj_stack, z_stack, dst_scale, b_sum)


# ----------------------------------------------------------------------------
# Kernel A ("ax_first", used when f_in < f_out):
#   out[d] = relu( sum_r ( dsc_r[d] * sum_s A01[r,d_tile,s_tile] @ (ssc_r[s_tile] * X(r)[s_tile]) )
#                  @ W[r] + b_sum )
# X blocks come from ONE concatenated source-feature array; the per-relation start block is
# scalar-prefetched, so identical features are never duplicated per relation in HBM.
# The full bf16 W stack is kept VMEM-resident (constant index_map).
# ----------------------------------------------------------------------------
def _ax_w_kernel(off_ref, adj_ref, x_ref, ssc_ref, w_ref, dsc_ref, b_ref, o_ref, acc_ref,
                 *, apply_relu):
    del off_ref  # only used inside the index_maps
    r = pl.program_id(1)
    s = pl.program_id(2)

    @pl.when(jnp.logical_and(r == 0, s == 0))
    def _():
        o_ref[...] = jnp.zeros_like(o_ref)

    @pl.when(s == 0)
    def _():
        acc_ref[...] = jnp.zeros_like(acc_ref)

    a = adj_ref[...].astype(jnp.bfloat16)                                  # 0/1, exact
    x = (x_ref[...].astype(jnp.float32) * ssc_ref[...]).astype(jnp.bfloat16)  # fold D_src^{-1/2}
    acc_ref[...] += jnp.dot(a, x, preferred_element_type=jnp.float32)

    @pl.when(s == pl.program_id(2) * 0 + pl.num_programs(2) - 1)
    def _():
        # per-relation dst normalization, then the small (dst_tile,f_in)@(f_in,f_out) in bf16
        part = (acc_ref[...] * dsc_ref[...]).astype(jnp.bfloat16)
        o_ref[...] += jnp.dot(part, w_ref[r], preferred_element_type=jnp.float32)

    # NOTE: epilogue relies on axes 1/2 being sequential "arbitrary" reduction axes iterated
    # innermost for every dst tile; do not mark them "parallel" or reorder the grid.
    @pl.when(jnp.logical_and(r == pl.num_programs(1) - 1,
                             s == pl.num_programs(2) - 1))
    def _():
        out = o_ref[...] + b_ref[...]
        if apply_relu:
            out = jnp.maximum(out, 0.0)
        o_ref[...] = out


def hetero_layer_ax_w(src_block_off, adj_stack, x_all, src_scale, w_stack, dst_scale, b_sum, *,
                      apply_relu, dst_tile, src_tile):
    """src_block_off: (R,) i32; adj_stack: (R, Ndp, Nsp) int8; x_all: (n_rows, Fip) bf16;
       src_scale: (R, Nsp, 1) f32; w_stack: (R, Fip, Fop) bf16; dst_scale: (R, Ndp, 1) f32;
       b_sum: (1, Fop) f32."""
    R, ndp, nsp = adj_stack.shape
    fip = x_all.shape[-1]
    fop = w_stack.shape[-1]
    grid = (ndp // dst_tile, R, nsp // src_tile)
    kernel = functools.partial(_ax_w_kernel, apply_relu=apply_relu)
    return pl.pallas_call(
        kernel,
        out_shape=jax.ShapeDtypeStruct((ndp, fop), jnp.float32),
        grid_spec=pltpu.PrefetchScalarGridSpec(
            num_scalar_prefetch=1,
            grid=grid,
            in_specs=[
                pl.BlockSpec((None, dst_tile, src_tile), lambda d, r, s, off: (r, d, s)),
                pl.BlockSpec((src_tile, fip), lambda d, r, s, off: (off[r] + s, 0)),
                pl.BlockSpec((None, src_tile, 1), lambda d, r, s, off: (r, s, 0)),
                pl.BlockSpec((R, fip, fop), lambda d, r, s, off: (0, 0, 0)),   # VMEM-resident
                pl.BlockSpec((None, dst_tile, 1), lambda d, r, s, off: (r, d, 0)),
                pl.BlockSpec((1, fop), lambda d, r, s, off: (0, 0)),
            ],
            out_specs=pl.BlockSpec((dst_tile, fop), lambda d, r, s, off: (d, 0)),
            scratch_shapes=[pltpu.VMEM((dst_tile, fip), jnp.float32)],
        ),
        compiler_params=pltpu.CompilerParams(
            dimension_semantics=("parallel", "arbitrary", "arbitrary")),
    )(src_block_off, adj_stack, x_all, src_scale, w_stack, dst_scale, b_sum)


# ----------------------------------------------------------------------------
# RGCN module (3 hetero conv layers), deterministic parameter init.
# graph[etype] is the RAW 0/1 dense adjacency (n_dst, n_src); degree normalization is done here.
# ----------------------------------------------------------------------------
class RGCNPallas:
    def __init__(self, in_feats, hid_feats, out_feats, rel_names, key, dropout=0.2):
        self.rel_names = rel_names
        self.dropout = dropout  # identity at inference (training=False)
        self.dst_types = sorted({rel[2] for rel in rel_names})
        self.params = []      # per layer: {etype: (W, b)}
        self.layer_dims = []  # per layer: (din, dout)
        self._graph_cache = {"graph_id": None, "preps": {}}

        dims = [
            ({nt: in_feats[nt] for nt in in_feats}, hid_feats),
            (hid_feats, hid_feats),
            (hid_feats, out_feats),
        ]
        for din, dout in dims:
            layer_params = {}
            for rel in rel_names:
                srctype, etype, _ = rel
                f_in = din[srctype] if isinstance(din, dict) else din
                key, kw, kb = jax.random.split(key, 3)
                bound = (6.0 / (f_in + dout)) ** 0.5  # xavier-uniform, as in dgl GraphConv
                w = jax.random.uniform(kw, (f_in, dout), jnp.float32, -bound, bound)
                b = 0.01 * jax.random.normal(kb, (dout,), jnp.float32)
                layer_params[etype] = (w, b)
            self.params.append(layer_params)
            self.layer_dims.append((din, dout))

    # --- graph-only preprocessing, cached across layers and forward calls -------------------
    def _graph_prep_getter(self, graph):
        if self._graph_cache.get("graph_id") != id(graph):
            self._graph_cache = {"graph_id": id(graph), "preps": {}}
        preps = self._graph_cache["preps"]

        def get(dst, rels):
            key = (dst, tuple(r[1] for r in rels))
            if key not in preps:
                preps[key] = self._build_prep(graph, rels)
            return preps[key]
        return get

    def _build_prep(self, graph, rels):
        n_dst = graph[rels[0][1]].shape[0]
        dst_tile = _choose_dst_tile(n_dst)
        n_dst_p = _round_up(n_dst, dst_tile)
        n_src_max = max(graph[r[1]].shape[1] for r in rels)
        src_tile = min(SRC_TILE_MAX, _round_up(n_src_max, LANE))
        n_src_p = _round_up(n_src_max, src_tile)

        adj_list, dsc_list, ssc_list = [], [], []
        for (_, etype, _) in rels:
            a01 = (graph[etype] != 0).astype(jnp.float32)
            in_deg = jnp.clip(jnp.sum(a01, axis=1), 1.0, None)    # per dst node
            out_deg = jnp.clip(jnp.sum(a01, axis=0), 1.0, None)   # per src node
            adj_list.append(_pad2(a01.astype(jnp.int8), n_dst_p, n_src_p))
            dsc_list.append(_pad2((in_deg ** -0.5)[:, None], n_dst_p, 1))
            ssc_list.append(jnp.pad((out_deg ** -0.5)[:, None],
                                    ((0, n_src_p - a01.shape[1]), (0, 0)),
                                    constant_values=1.0))
        src_types = list(dict.fromkeys(r[0] for r in rels))
        blocks_per_src = n_src_p // src_tile
        off = jnp.asarray([src_types.index(r[0]) * blocks_per_src for r in rels], jnp.int32)
        return dict(
            dst_tile=dst_tile, src_tile=src_tile,
            n_dst=n_dst, n_dst_p=n_dst_p, n_src_p=n_src_p,
            adj_i8=jnp.stack(adj_list),          # (R, Ndp, Nsp) int8, raw 0/1
            dst_scale=jnp.stack(dsc_list),       # (R, Ndp, 1) f32   D_dst^{-1/2}
            src_scale=jnp.stack(ssc_list),       # (R, Nsp, 1) f32   D_src^{-1/2}
            src_types=src_types, off=off,
        )

    # --- one hetero-conv layer --------------------------------------------------------------
    def _run_layer(self, prep_get, h, layer_params, dout, apply_relu, use_reference):
        fop = _round_up(dout, LANE)
        new_h = {}
        for dst in self.dst_types:
            rels = [r for r in self.rel_names if r[2] == dst and r[0] in h]
            if not rels:
                continue
            prep = prep_get(dst, rels)
            dst_tile, src_tile = prep["dst_tile"], prep["src_tile"]
            n_dst, n_dst_p, n_src_p = prep["n_dst"], prep["n_dst_p"], prep["n_src_p"]

            # Pre-summed bias over relations (added once, at the last grid step).
            b_sum = jnp.zeros((1, fop), jnp.float32)
            for r in rels:
                b_sum = b_sum + jnp.pad(layer_params[r[1]][1], (0, fop - dout))[None, :]

            f_in_max = max(h[r[0]].shape[1] for r in rels)
            ax_first = f_in_max < dout  # same order decision DGL GraphConv makes

            if ax_first:
                # (A @ X) @ W : big matmul over the smaller feature dim f_in.
                fip = _round_up(f_in_max, LANE)
                src_types = prep["src_types"]
                x_by_src = {st: _pad2(h[st], n_src_p, fip).astype(jnp.bfloat16)
                            for st in src_types}
                x_all = jnp.concatenate([x_by_src[st] for st in src_types], axis=0)
                w_stack = jnp.stack([_pad2(layer_params[r[1]][0], fip, fop)
                                     for r in rels]).astype(jnp.bfloat16)

                if use_reference:
                    out = jnp.zeros((n_dst_p, fop), jnp.float32)
                    for i, r in enumerate(rels):
                        x_sc = (x_by_src[r[0]].astype(jnp.float32)
                                * prep["src_scale"][i]).astype(jnp.bfloat16)
                        msg = jnp.dot(prep["adj_i8"][i].astype(jnp.bfloat16), x_sc,
                                      preferred_element_type=jnp.float32)
                        part = (msg * prep["dst_scale"][i]).astype(jnp.bfloat16)
                        out = out + jnp.dot(part, w_stack[i],
                                            preferred_element_type=jnp.float32)
                    out = out + b_sum
                    if apply_relu:
                        out = jnp.maximum(out, 0.0)
                else:
                    out = hetero_layer_ax_w(prep["off"], prep["adj_i8"], x_all,
                                            prep["src_scale"], w_stack, prep["dst_scale"],
                                            b_sum, apply_relu=apply_relu,
                                            dst_tile=dst_tile, src_tile=src_tile)
            else:
                # A @ (X @ W) : hoist the cheap X @ W (and the src-degree scale) to XLA.
                z_list = []
                for i, r in enumerate(rels):
                    w, _ = layer_params[r[1]]
                    z = jnp.dot(h[r[0]], w, preferred_element_type=jnp.float32)
                    z = _pad2(z, n_src_p, fop) * prep["src_scale"][i]   # fold D_src^{-1/2}
                    z_list.append(z.astype(jnp.bfloat16))
                z_stack = jnp.stack(z_list)

                if use_reference:
                    out = jnp.zeros((n_dst_p, fop), jnp.float32)
                    for i in range(len(rels)):
                        msg = jnp.dot(prep["adj_i8"][i].astype(jnp.bfloat16), z_stack[i],
                                      preferred_element_type=jnp.float32)
                        out = out + msg * prep["dst_scale"][i]
                    out = out + b_sum
                    if apply_relu:
                        out = jnp.maximum(out, 0.0)
                else:
                    out = hetero_layer_a_xw(prep["adj_i8"], z_stack, prep["dst_scale"], b_sum,
                                            apply_relu=apply_relu,
                                            dst_tile=dst_tile, src_tile=src_tile)

            new_h[dst] = out[:n_dst, :dout]
        return new_h

    def forward(self, graph, inputs, use_reference=False):
        prep_get = self._graph_prep_getter(graph)   # adjacency prep shared by all 3 layers
        h = inputs
        h = self._run_layer(prep_get, h, self.params[0], self.layer_dims[0][1], True, use_reference)
        h = self._run_layer(prep_get, h, self.params[1], self.layer_dims[1][1], True, use_reference)
        h = self._run_layer(prep_get, h, self.params[2], self.layer_dims[2][1], False, use_reference)
        return h


if __name__ == "__main__":
    key = jax.random.PRNGKey(0)

    # Small heterograph: two node types (different sizes), three relation types.
    node_counts = {"user": 40, "item": 56}
    rel_names = [
        ("user", "follows", "user"),
        ("user", "rates", "item"),
        ("item", "rated_by", "user"),
    ]
    in_feats = {"user": 16, "item": 24}
    hid_feats, out_feats = 32, 8

    graph = {}
    for (s, e, d) in rel_names:
        key, k = jax.random.split(key)
        graph[e] = jax.random.bernoulli(
            k, 0.3, (node_counts[d], node_counts[s])).astype(jnp.float32)   # raw 0/1 adjacency

    inputs = {}
    for nt in node_counts:
        key, k = jax.random.split(key)
        inputs[nt] = jax.random.normal(k, (node_counts[nt], in_feats[nt]), jnp.float32)

    key, k_model = jax.random.split(key)
    model = RGCNPallas(in_feats, hid_feats, out_feats, rel_names, k_model, dropout=0.2)

    out = model.forward(graph, inputs, use_reference=False)
    out = jax.tree_util.tree_map(jax.block_until_ready, out)

    # Pure-JAX reference of the same factored math (same bf16 casts, f32 accumulation).
    ref = model.forward(graph, inputs, use_reference=True)
    for nt in out:
        assert out[nt].shape == (node_counts[nt], out_feats)
        assert jnp.allclose(out[nt], ref[nt], atol=5e-3, rtol=5e-3), f"mismatch for {nt}"

    print("KERNEL_OK")
</pallas_src>

<mosaic_0001>
module attributes {stable_mosaic.version = 11 : i64} {
  func.func @_ax_w_kernel(%arg0: i32, %arg1: i32, %arg2: i32, %arg3: memref<1xi32, #tpu.memory_space<smem>>, %arg4: memref<1x64x128xi8, #tpu.memory_space<vmem>>, %arg5: memref<128x128xbf16, #tpu.memory_space<vmem>>, %arg6: memref<1x128x1xf32, #tpu.memory_space<vmem>>, %arg7: memref<1x128x128xbf16, #tpu.memory_space<vmem>>, %arg8: memref<1x64x1xf32, #tpu.memory_space<vmem>>, %arg9: memref<1x128xf32, #tpu.memory_space<vmem>>, %arg10: memref<64x128xf32, #tpu.memory_space<vmem>>, %arg11: memref<64x128xf32, #tpu.memory_space<vmem>>) attributes {dimension_semantics = [#tpu.dimension_semantics<parallel>, #tpu.dimension_semantics<arbitrary>, #tpu.dimension_semantics<arbitrary>], iteration_bounds = array<i64: 1, 1, 1>, scalar_prefetch = 1 : i64, scratch_operands = 1 : i64, tpu.core_type = #tpu.core_type<tc>, window_params = [{transform_indices = @transform_0, window_bounds = array<i64: 1, 64, 128>}, {transform_indices = @transform_1, window_bounds = array<i64: 128, 128>}, {transform_indices = @transform_2, window_bounds = array<i64: 1, 128, 1>}, {pipeline_mode = #tpu.pipeline_mode<synchronous>, transform_indices = @transform_3, window_bounds = array<i64: 1, 128, 128>}, {transform_indices = @transform_4, window_bounds = array<i64: 1, 64, 1>}, {pipeline_mode = #tpu.pipeline_mode<synchronous>, transform_indices = @transform_5, window_bounds = array<i64: 1, 128>}, {transform_indices = @transform_6, window_bounds = array<i64: 64, 128>}]} {
    %c0_i32 = arith.constant 0 : i32
    %0 = arith.cmpi eq, %arg1, %c0_i32 : i32
    %c0_i32_0 = arith.constant 0 : i32
    %1 = arith.cmpi eq, %arg2, %c0_i32_0 : i32
    %2 = arith.andi %0, %1 : i1
    %3 = arith.extui %2 : i1 to i32
    %c0_i32_1 = arith.constant 0 : i32
    %4 = arith.cmpi ne, %3, %c0_i32_1 : i32
    scf.if %4 {
      %cst_21 = arith.constant 0.000000e+00 : f32
      %33 = vector.broadcast %cst_21 : f32 to vector<64x128xf32>
      %c0_22 = arith.constant 0 : index
      %c0_23 = arith.constant 0 : index
      %34 = vector.load %arg10[%c0_22, %c0_23] : memref<64x128xf32, #tpu.memory_space<vmem>>, vector<64x128xf32>
      tpu.vector_store %arg10[%c0_22, %c0_23], %33 {strides = array<i32>} : memref<64x128xf32, #tpu.memory_space<vmem>>, vector<64x128xf32>,
    } else {
    }
    %c0_i32_2 = arith.constant 0 : i32
    %5 = arith.cmpi eq, %arg2, %c0_i32_2 : i32
    %6 = arith.extui %5 : i1 to i32
    %c0_i32_3 = arith.constant 0 : i32
    %7 = arith.cmpi ne, %6, %c0_i32_3 : i32
    scf.if %7 {
      %cst_21 = arith.constant 0.000000e+00 : f32
      %33 = vector.broadcast %cst_21 : f32 to vector<64x128xf32>
      %c0_22 = arith.constant 0 : index
      %c0_23 = arith.constant 0 : index
      %34 = vector.load %arg11[%c0_22, %c0_23] : memref<64x128xf32, #tpu.memory_space<vmem>>, vector<64x128xf32>
      tpu.vector_store %arg11[%c0_22, %c0_23], %33 {strides = array<i32>} : memref<64x128xf32, #tpu.memory_space<vmem>>, vector<64x128xf32>,
    } else {
    }
    %c0 = arith.constant 0 : index
    %c0_4 = arith.constant 0 : index
    %c0_5 = arith.constant 0 : index
    %8 = vector.load %arg4[%c0, %c0_4, %c0_5] : memref<1x64x128xi8, #tpu.memory_space<vmem>>, vector<1x64x128xi8>
    %9 = vector.shape_cast %8 : vector<1x64x128xi8> to vector<64x128xi8>
    %10 = arith.sitofp %9 : vector<64x128xi8> to vector<64x128xbf16>
    %c0_6 = arith.constant 0 : index
    %c0_7 = arith.constant 0 : index
    %11 = vector.load %arg5[%c0_6, %c0_7] : memref<128x128xbf16, #tpu.memory_space<vmem>>, vector<128x128xbf16>
    %12 = arith.extf %11 : vector<128x128xbf16> to vector<128x128xf32>
    %c0_8 = arith.constant 0 : index
    %c0_9 = arith.constant 0 : index
    %c0_10 = arith.constant 0 : index
    %13 = vector.load %arg6[%c0_8, %c0_9, %c0_10] : memref<1x128x1xf32, #tpu.memory_space<vmem>>, vector<1x128x1xf32>
    %14 = vector.shape_cast %13 : vector<1x128x1xf32> to vector<128x1xf32>
    %15 = vector.broadcast %14 : vector<128x1xf32> to vector<128x128xf32>
    %16 = arith.mulf %12, %15 : vector<128x128xf32>
    %17 = arith.truncf %16 : vector<128x128xf32> to vector<128x128xbf16>
    %c0_11 = arith.constant 0 : index
    %c0_12 = arith.constant 0 : index
    %18 = vector.load %arg11[%c0_11, %c0_12] : memref<64x128xf32, #tpu.memory_space<vmem>>, vector<64x128xf32>
    %cst = arith.constant dense<0.000000e+00> : vector<64x128xf32>
    %19 = tpu.matmul %10, %17, %cst {dimension_numbers = #tpu.dot_dimension_numbers<[1], [0], [0], [1], [0, 0, 1, 1], [], []>} : vector<64x128xbf16>, vector<128x128xbf16>, vector<64x128xf32> -> vector<64x128xf32>
    %20 = arith.addf %18, %19 : vector<64x128xf32>
    %c0_13 = arith.constant 0 : index
    %c0_14 = arith.constant 0 : index
    %21 = vector.load %arg11[%c0_13, %c0_14] : memref<64x128xf32, #tpu.memory_space<vmem>>, vector<64x128xf32>
    tpu.vector_store %arg11[%c0_13, %c0_14], %20 {strides = array<i32>} : memref<64x128xf32, #tpu.memory_space<vmem>>, vector<64x128xf32>,
    %c0_i32_15 = arith.constant 0 : i32
    %22 = arith.muli %arg2, %c0_i32_15 : i32
    %c1_i32 = arith.constant 1 : i32
    %23 = arith.addi %22, %c1_i32 : i32
    %c1_i32_16 = arith.constant 1 : i32
    %24 = arith.subi %23, %c1_i32_16 : i32
    %25 = arith.cmpi eq, %arg2, %24 : i32
    %26 = arith.extui %25 : i1 to i32
    %c0_i32_17 = arith.constant 0 : i32
    %27 = arith.cmpi ne, %26, %c0_i32_17 : i32
    scf.if %27 {
      %c0_21 = arith.constant 0 : index
      %c0_22 = arith.constant 0 : index
      %33 = vector.load %arg11[%c0_21, %c0_22] : memref<64x128xf32, #tpu.memory_space<vmem>>, vector<64x128xf32>
      %c0_23 = arith.constant 0 : index
      %c0_24 = arith.constant 0 : index
      %c0_25 = arith.constant 0 : index
      %34 = vector.load %arg8[%c0_23, %c0_24, %c0_25] : memref<1x64x1xf32, #tpu.memory_space<vmem>>, vector<1x64x1xf32>
      %35 = vector.shape_cast %34 : vector<1x64x1xf32> to vector<64x1xf32>
      %36 = vector.broadcast %35 : vector<64x1xf32> to vector<64x128xf32>
      %37 = arith.mulf %33, %36 : vector<64x128xf32>
      %38 = arith.truncf %37 : vector<64x128xf32> to vector<64x128xbf16>
      %c0_26 = arith.constant 0 : index
      %c0_27 = arith.constant 0 : index
      %39 = vector.load %arg10[%c0_26, %c0_27] : memref<64x128xf32, #tpu.memory_space<vmem>>, vector<64x128xf32>
      %40 = arith.index_cast %arg1 : i32 to index
      %c0_28 = arith.constant 0 : index
      %c0_29 = arith.constant 0 : index
      %41 = vector.load %arg7[%40, %c0_28, %c0_29] : memref<1x128x128xbf16, #tpu.memory_space<vmem>>, vector<1x128x128xbf16>
      %42 = vector.shape_cast %41 : vector<1x128x128xbf16> to vector<128x128xbf16>
      %cst_30 = arith.constant dense<0.000000e+00> : vector<64x128xf32>
      %43 = tpu.matmul %38, %42, %cst_30 {dimension_numbers = #tpu.dot_dimension_numbers<[1], [0], [0], [1], [0, 0, 1, 1], [], []>} : vector<64x128xbf16>, vector<128x128xbf16>, vector<64x128xf32> -> vector<64x128xf32>
      %44 = arith.addf %39, %43 : vector<64x128xf32>
      %c0_31 = arith.constant 0 : index
      %c0_32 = arith.constant 0 : index
      %45 = vector.load %arg10[%c0_31, %c0_32] : memref<64x128xf32, #tpu.memory_space<vmem>>, vector<64x128xf32>
      tpu.vector_store %arg10[%c0_31, %c0_32], %44 {strides = array<i32>} : memref<64x128xf32, #tpu.memory_space<vmem>>, vector<64x128xf32>,
    } else {
    }
    %c0_i32_18 = arith.constant 0 : i32
    %28 = arith.cmpi eq, %arg1, %c0_i32_18 : i32
    %c0_i32_19 = arith.constant 0 : i32
    %29 = arith.cmpi eq, %arg2, %c0_i32_19 : i32
    %30 = arith.andi %28, %29 : i1
    %31 = arith.extui %30 : i1 to i32
    %c0_i32_20 = arith.constant 0 : i32
    %32 = arith.cmpi ne, %31, %c0_i32_20 : i32
    scf.if %32 {
      %c0_21 = arith.constant 0 : index
      %c0_22 = arith.constant 0 : index
      %33 = vector.load %arg10[%c0_21, %c0_22] : memref<64x128xf32, #tpu.memory_space<vmem>>, vector<64x128xf32>
      %c0_23 = arith.constant 0 : index
      %c0_24 = arith.constant 0 : index
      %34 = vector.load %arg9[%c0_23, %c0_24] : memref<1x128xf32, #tpu.memory_space<vmem>>, vector<1x128xf32>
      %35 = vector.broadcast %34 : vector<1x128xf32> to vector<64x128xf32>
      %36 = arith.addf %33, %35 : vector<64x128xf32>
      %cst_25 = arith.constant 0.000000e+00 : f32
      %37 = vector.broadcast %cst_25 : f32 to vector<64x128xf32>
      %38 = arith.maximumf %36, %37 : vector<64x128xf32>
      %c0_26 = arith.constant 0 : index
      %c0_27 = arith.constant 0 : index
      %39 = vector.load %arg10[%c0_26, %c0_27] : memref<64x128xf32, #tpu.memory_space<vmem>>, vector<64x128xf32>
      tpu.vector_store %arg10[%c0_26, %c0_27], %38 {strides = array<i32>} : memref<64x128xf32, #tpu.memory_space<vmem>>, vector<64x128xf32>,
    } else {
    }
    return
  }
  func.func @transform_0(%arg0: i32, %arg1: i32, %arg2: i32, %arg3: memref<1xi32, #tpu.memory_space<smem>>) -> (i32, i32, i32) {
    %c0_i32 = arith.constant 0 : i32
    return %arg1, %arg0, %arg2 : i32, i32, i32
  }
  func.func @transform_1(%arg0: i32, %arg1: i32, %arg2: i32, %arg3: memref<1xi32, #tpu.memory_space<smem>>) -> (i32, i32) {
    %0 = arith.index_cast %arg1 : i32 to index
    %1 = memref.load %arg3[%0] : memref<1xi32, #tpu.memory_space<smem>>
    %2 = arith.addi %1, %arg2 : i32
    %c0_i32 = arith.constant 0 : i32
    %c0_i32_0 = arith.constant 0 : i32
    return %2, %c0_i32 : i32, i32
  }
  func.func @transform_2(%arg0: i32, %arg1: i32, %arg2: i32, %arg3: memref<1xi32, #tpu.memory_space<smem>>) -> (i32, i32, i32) {
    %c0_i32 = arith.constant 0 : i32
    %c0_i32_0 = arith.constant 0 : i32
    return %arg1, %arg2, %c0_i32 : i32, i32, i32
  }
  func.func @transform_3(%arg0: i32, %arg1: i32, %arg2: i32, %arg3: memref<1xi32, #tpu.memory_space<smem>>) -> (i32, i32, i32) {
    %c0_i32 = arith.constant 0 : i32
    %c0_i32_0 = arith.constant 0 : i32
    %c0_i32_1 = arith.constant 0 : i32
    %c0_i32_2 = arith.constant 0 : i32
    return %c0_i32, %c0_i32_0, %c0_i32_1 : i32, i32, i32
  }
  func.func @transform_4(%arg0: i32, %arg1: i32, %arg2: i32, %arg3: memref<1xi32, #tpu.memory_space<smem>>) -> (i32, i32, i32) {
    %c0_i32 = arith.constant 0 : i32
    %c0_i32_0 = arith.constant 0 : i32
    return %arg1, %arg0, %c0_i32 : i32, i32, i32
  }
  func.func @transform_5(%arg0: i32, %arg1: i32, %arg2: i32, %arg3: memref<1xi32, #tpu.memory_space<smem>>) -> (i32, i32) {
    %c0_i32 = arith.constant 0 : i32
    %c0_i32_0 = arith.constant 0 : i32
    %c0_i32_1 = arith.constant 0 : i32
    return %c0_i32, %c0_i32_0 : i32, i32
  }
  func.func @transform_6(%arg0: i32, %arg1: i32, %arg2: i32, %arg3: memref<1xi32, #tpu.memory_space<smem>>) -> (i32, i32) {
    %c0_i32 = arith.constant 0 : i32
    %c0_i32_0 = arith.constant 0 : i32
    return %arg0, %c0_i32 : i32, i32
  }
}

</mosaic_0001>

<llo_original>
// kernel: tpu_custom_call.1
$region0: #{tpu_custom_call.1}
  #allocation0 [shape = 'u32[]', space=smem, size = 0x4, offset = 0x4, fixed_abs, tag = 'smem constant byte address 0x4 - core index']
  #allocation1 [shape = 'u32[144,128]{1,0:T(1,128)}', space=vmem, size = 0x12000, scoped, tag = 'internal scratch']
  #allocation2 [shape = 'f32[64,128]{1,0:T(8,128)}', space=vmem, size = 0x8000, scoped, tag = 'scratch operand']
  #allocation3 [shape = 's32[1]{0}', space=sflag, size = 0x4, scoped, tag = 'scoped memory for tpu_custom_call.1']
  #allocation4 [shape = 's32[1]{0:T(128)S(6)}', space=smem, size = 0x200, scoped, tag = 'prefetched SMEM operand 0']
  %s0 = inlined_call_operand.<no memory space> [shape: s32[1], index: 0, kind: input, shape index: {}]
  %s1 = inlined_call_operand.vmem [shape: s8[1,64,128], index: 1, kind: input, shape index: {}]
  %s2 = inlined_call_operand.vmem [shape: bf16[128,128], index: 2, kind: input, shape index: {}]
  %s3 = inlined_call_operand.vmem [shape: f32[1,128,1], index: 3, kind: input, shape index: {}]
  %s4 = inlined_call_operand.vmem [shape: bf16[1,128,128], index: 4, kind: input, shape index: {}]
  %s5 = inlined_call_operand.vmem [shape: f32[1,64,1], index: 5, kind: input, shape index: {}]
  %s6 = inlined_call_operand.vmem [shape: f32[1,128], index: 6, kind: input, shape index: {}]
  %s7 = inlined_call_operand.hbm [shape: f32[64,128], index: 7, kind: output, shape index: {}]
  %s8 = sld [smem:[#allocation0]]
  $region50: #{tpu_custom_call.1} parent=0
    _
  %s10 = ssub.s32 1, %s8
  %s11 = scalar_select 0, %s10, %s8
  %12 = sst [smem:[#allocation4]] %s0
  $region1: #{tpu_custom_call.1} parent=0
    #allocation5 [shape = 'u8[32768]{0}', space=vmem, size = 0x8000, scoped, tag = 'output window, operand 0, single buffered']
    #allocation6 [shape = 's32[1]{0}', space=sflag, size = 0x4, scoped, tag = 'scoped memory for tpu_custom_call.1']
    %13 = vsyncpa [#allocation6], 0
    // Predicated region
    $region2: #{tpu_custom_call.1} parent=1 // pred_check
      _
    $region3: #{tpu_custom_call.1} parent=1 // pred_check_branch
      %15 = sbr.rel (0) target = $region5
    $region4: #{tpu_custom_call.1} parent=1 // pred_region
      _
    $region5: #{tpu_custom_call.1} parent=1 // pred_fallthru
      _
    // Predicated region
    $region6: #{tpu_custom_call.1} parent=1 // pred_check
      _
    $region7: #{tpu_custom_call.1} parent=1 // pred_check_branch
      %17 = sbr.rel (0) target = $region9
    $region8: #{tpu_custom_call.1} parent=1 // pred_region
      %s18 = sld [smem:[#allocation4]]
      %s19 = sadd.s32 %s18, 0
      %s20 = smul.u32 16, %s19
      %p21 = scmp.lt.s32.totalorder %s20, 15
      %s22 = scalar_select %p21, %s20, 15
      %s23 = smul.addr %s22, 4
      %s24 = scalar_lea.vmem %s2, %s23
      %s25 = sld [smem:[#allocation4]]
      %s26 = sadd.s32 %s25, 0
      %s27 = smul.u32 16, %s26
    $region9: #{tpu_custom_call.1} parent=1 // pred_fallthru
      _
    // Predicated region
    $region10: #{tpu_custom_call.1} parent=1 // pred_check
      _
    $region11: #{tpu_custom_call.1} parent=1 // pred_check_branch
      %29 = sbr.rel (0) target = $region13
    $region12: #{tpu_custom_call.1} parent=1 // pred_region
      _
    $region13: #{tpu_custom_call.1} parent=1 // pred_fallthru
      _
    // Predicated region
    $region14: #{tpu_custom_call.1} parent=1 // pred_check
      _
    $region15: #{tpu_custom_call.1} parent=1 // pred_check_branch
      %31 = sbr.rel (0) target = $region17
    $region16: #{tpu_custom_call.1} parent=1 // pred_region
      _
    $region17: #{tpu_custom_call.1} parent=1 // pred_fallthru
      _
    // Predicated region
    $region18: #{tpu_custom_call.1} parent=1 // pred_check
      _
    $region19: #{tpu_custom_call.1} parent=1 // pred_check_branch
      %33 = sbr.rel (0) target = $region21
    $region20: #{tpu_custom_call.1} parent=1 // pred_region
      _
    $region21: #{tpu_custom_call.1} parent=1 // pred_fallthru
      _
    // Predicated region
    $region22: #{tpu_custom_call.1} parent=1 // pred_check
      _
    $region23: #{tpu_custom_call.1} parent=1 // pred_check_branch
      %35 = sbr.rel (0) target = $region25
    $region24: #{tpu_custom_call.1} parent=1 // pred_region
      _
    $region25: #{tpu_custom_call.1} parent=1 // pred_fallthru
      _
    %s36 = sld [smem:[#allocation4]]
    %s37 = sadd.s32 %s36, 0
    %s38 = smul.u32 16, %s37
    %p39 = scmp.lt.s32.totalorder %s38, 15
    %s40 = scalar_select %p39, %s38, 15
    %s41 = smul.addr %s40, 4
    %s42 = scalar_lea.vmem %s2, %s41
    %s43 = sld [smem:[#allocation4]]
    %s44 = sadd.s32 %s43, 0
    %s45 = smul.u32 16, %s44
    %p46 = scmp.lt.s32.totalorder %s45, 15
    %s47 = scalar_select %p46, %s45, 15
    %s48 = smul.addr %s47, 4
    %s49 = scalar_lea.vmem %s2, %s48
    %s50 = sld [smem:[#allocation4]]
    %s51 = sadd.s32 %s50, 0
    %s52 = smul.u32 16, %s51
    %p54 = scmp.eq.s32.totalorder 0, 0
    %p55 = scmp.eq.s32.totalorder 0, 0
    %p56 = pnand %p54, %p55
    %p57 = pneg %p56
    // Predicated region
    $region26: #{tpu_custom_call.1} parent=1 // pred_check
      _
    $region27: #{tpu_custom_call.1} parent=1 // pred_check_branch
      %59 = sbr.rel (%p56) target = $region29
    $region28: #{tpu_custom_call.1} parent=1 // pred_region
      %60 = vst [vmem:[#allocation5] sm:$0xff] 0.0
      %61 = vst [vmem:[#allocation5 + $0x8] sm:$0xff] 0.0
      %62 = vst [vmem:[#allocation5 + $0x10] sm:$0xff] 0.0
      %63 = vst [vmem:[#allocation5 + $0x18] sm:$0xff] 0.0
      %64 = vst [vmem:[#allocation5 + $0x20] sm:$0xff] 0.0
      %65 = vst [vmem:[#allocation5 + $0x28] sm:$0xff] 0.0
      %66 = vst [vmem:[#allocation5 + $0x30] sm:$0xff] 0.0
      %67 = vst [vmem:[#allocation5 + $0x38] sm:$0xff] 0.0
    $region29: #{tpu_custom_call.1} parent=1 // pred_fallthru
      _
    // Predicated region
    $region30: #{tpu_custom_call.1} parent=1 // pred_check
      %p68 = pneg %p55
    $region31: #{tpu_custom_call.1} parent=1 // pred_check_branch
      %70 = sbr.rel (%p68) target = $region33
    $region32: #{tpu_custom_call.1} parent=1 // pred_region
      %71 = vst [vmem:[#allocation2] sm:$0xff] 0.0
      %72 = vst [vmem:[#allocation2 + $0x8] sm:$0xff] 0.0
      %73 = vst [vmem:[#allocation2 + $0x10] sm:$0xff] 0.0
      %74 = vst [vmem:[#allocation2 + $0x18] sm:$0xff] 0.0
      %75 = vst [vmem:[#allocation2 + $0x20] sm:$0xff] 0.0
      %76 = vst [vmem:[#allocation2 + $0x28] sm:$0xff] 0.0
      %77 = vst [vmem:[#allocation2 + $0x30] sm:$0xff] 0.0
      %78 = vst [vmem:[#allocation2 + $0x38] sm:$0xff] 0.0
    $region33: #{tpu_custom_call.1} parent=1 // pred_fallthru
      _
    %v79 = vld [vmem:[%s1] sm:$0xff]
    %v80 = vld [vmem:[%s1 + $0x8] sm:$0xff]
    %v81 = vunpack.c.l.s8.bf16 %v79
    %v82 = vunpack.c.h.s8.bf16 %v79
    %v83 = vunpack.c.l.s8.bf16 %v80
    %v84 = vunpack.c.h.s8.bf16 %v80
    %v85 = vld [vmem:[%s49] sm:$0xf]
    %v86 = vld [vmem:[%s49 + $0x4] sm:$0xf]
    %v87 = vld [vmem:[%s49 + $0x8] sm:$0xf]
    %v88 = vld [vmem:[%s49 + $0xc] sm:$0xf]
    %v89 = vld [vmem:[%s49 + $0x10] sm:$0xf]
    %v90 = vld [vmem:[%s49 + $0x14] sm:$0xf]
    %v91 = vld [vmem:[%s49 + $0x18] sm:$0xf]
    %v92 = vld [vmem:[%s49 + $0x1c] sm:$0xf]
    %v93 = vld [vmem:[%s49 + $0x20] sm:$0xf]
    %v94 = vld [vmem:[%s49 + $0x24] sm:$0xf]
    %v95 = vld [vmem:[%s49 + $0x28] sm:$0xf]
    %v96 = vld [vmem:[%s49 + $0x2c] sm:$0xf]
    %v97 = vld [vmem:[%s49 + $0x30] sm:$0xf]
    %v98 = vld [vmem:[%s49 + $0x34] sm:$0xf]
    %v99 = vld [vmem:[%s49 + $0x38] sm:$0xf]
    %v100 = vld [vmem:[%s49 + $0x3c] sm:$0xf]
    %v101 = vunpack.c.l.bf16 %v85
    %v102 = vunpack.c.l.bf16 %v86
    %v103 = vunpack.c.l.bf16 %v87
    %v104 = vunpack.c.l.bf16 %v88
    %v105 = vunpack.c.l.bf16 %v89
    %v106 = vunpack.c.l.bf16 %v90
    %v107 = vunpack.c.l.bf16 %v91
    %v108 = vunpack.c.l.bf16 %v92
    %v109 = vunpack.c.l.bf16 %v93
    %v110 = vunpack.c.l.bf16 %v94
    %v111 = vunpack.c.l.bf16 %v95
    %v112 = vunpack.c.l.bf16 %v96
    %v113 = vunpack.c.l.bf16 %v97
    %v114 = vunpack.c.l.bf16 %v98
    %v115 = vunpack.c.l.bf16 %v99
    %v116 = vunpack.c.l.bf16 %v100
    %v117 = vld [vmem:[%s3] sm:$0xff]
    %v118 = vld [vmem:[%s3 + $0x8] sm:$0xff]
    %v119 = vld [vmem:[%s3 + $0x10] sm:$0xff]
    %v120 = vld [vmem:[%s3 + $0x18] sm:$0xff]
    %v121 = vld [vmem:[%s3 + $0x20] sm:$0xff]
    %v122 = vld [vmem:[%s3 + $0x28] sm:$0xff]
    %v123 = vld [vmem:[%s3 + $0x30] sm:$0xff]
    %v124 = vld [vmem:[%s3 + $0x38] sm:$0xff]
    %v125 = vld [vmem:[%s3 + $0x40] sm:$0xff]
    %v126 = vld [vmem:[%s3 + $0x48] sm:$0xff]
    %v127 = vld [vmem:[%s3 + $0x50] sm:$0xff]
    %v128 = vld [vmem:[%s3 + $0x58] sm:$0xff]
    %v129 = vld [vmem:[%s3 + $0x60] sm:$0xff]
    %v130 = vld [vmem:[%s3 + $0x68] sm:$0xff]
    %v131 = vld [vmem:[%s3 + $0x70] sm:$0xff]
    %v132 = vld [vmem:[%s3 + $0x78] sm:$0xff]
    %134 = vset.pattern.permute.xlu0 0
    %135 = vperm.xlu0 %134, %v117
    %v136 = vpop.permute.xlu0 %135
    %139 = vset.pattern.permute.xlu0 0
    %140 = vperm.xlu0 %139, %v118
    %v141 = vpop.permute.xlu0 %140
    %144 = vset.pattern.permute.xlu0 0
    %145 = vperm.xlu0 %144, %v119
    %v146 = vpop.permute.xlu0 %145
    %149 = vset.pattern.permute.xlu0 0
    %150 = vperm.xlu0 %149, %v120
    %v151 = vpop.permute.xlu0 %150
    %154 = vset.pattern.permute.xlu0 0
    %155 = vperm.xlu0 %154, %v121
    %v156 = vpop.permute.xlu0 %155
    %159 = vset.pattern.permute.xlu0 0
    %160 = vperm.xlu0 %159, %v122
    %v161 = vpop.permute.xlu0 %160
    %164 = vset.pattern.permute.xlu0 0
    %165 = vperm.xlu0 %164, %v123
    %v166 = vpop.permute.xlu0 %165
    %169 = vset.pattern.permute.xlu0 0
    %170 = vperm.xlu0 %169, %v124
    %v171 = vpop.permute.xlu0 %170
    %174 = vset.pattern.permute.xlu0 0
    %175 = vperm.xlu0 %174, %v125
    %v176 = vpop.permute.xlu0 %175
    %179 = vset.pattern.permute.xlu0 0
    %180 = vperm.xlu0 %179, %v126
    %v181 = vpop.permute.xlu0 %180
    %184 = vset.pattern.permute.xlu0 0
    %185 = vperm.xlu0 %184, %v127
    %v186 = vpop.permute.xlu0 %185
    %189 = vset.pattern.permute.xlu0 0
    %190 = vperm.xlu0 %189, %v128
    %v191 = vpop.permute.xlu0 %190
    %194 = vset.pattern.permute.xlu0 0
    %195 = vperm.xlu0 %194, %v129
    %v196 = vpop.permute.xlu0 %195
    %199 = vset.pattern.permute.xlu0 0
    %200 = vperm.xlu0 %199, %v130
    %v201 = vpop.permute.xlu0 %200
    %204 = vset.pattern.permute.xlu0 0
    %205 = vperm.xlu0 %204, %v131
    %v206 = vpop.permute.xlu0 %205
    %209 = vset.pattern.permute.xlu0 0
    %210 = vperm.xlu0 %209, %v132
    %v211 = vpop.permute.xlu0 %210
    %v213 = vmul.f32 %v101, %v136
    %v214 = vmul.f32 %v102, %v141
    %v215 = vmul.f32 %v103, %v146
    %v216 = vmul.f32 %v104, %v151
    %v217 = vmul.f32 %v105, %v156
    %v218 = vmul.f32 %v106, %v161
    %v219 = vmul.f32 %v107, %v166
    %v220 = vmul.f32 %v108, %v171
    %v221 = vmul.f32 %v109, %v176
    %v222 = vmul.f32 %v110, %v181
    %v223 = vmul.f32 %v111, %v186
    %v224 = vmul.f32 %v112, %v191
    %v225 = vmul.f32 %v113, %v196
    %v226 = vmul.f32 %v114, %v201
    %v227 = vmul.f32 %v115, %v206
    %v228 = vmul.f32 %v116, %v211
    %v229 = vpack.c.bf16 %v214, %v213
    %v230 = vpack.c.bf16 %v216, %v215
    %v231 = vpack.c.bf16 %v218, %v217
    %v232 = vpack.c.bf16 %v220, %v219
    %v233 = vpack.c.bf16 %v222, %v221
    %v234 = vpack.c.bf16 %v224, %v223
    %v235 = vpack.c.bf16 %v226, %v225
    %v236 = vpack.c.bf16 %v228, %v227
    %v237 = vld [vmem:[#allocation2] sm:$0xff]
    %v238 = vld [vmem:[#allocation2 + $0x8] sm:$0xff]
    %v239 = vld [vmem:[#allocation2 + $0x10] sm:$0xff]
    %v240 = vld [vmem:[#allocation2 + $0x18] sm:$0xff]
    %v241 = vld [vmem:[#allocation2 + $0x20] sm:$0xff]
    %v242 = vld [vmem:[#allocation2 + $0x28] sm:$0xff]
    %v243 = vld [vmem:[#allocation2 + $0x30] sm:$0xff]
    %v244 = vld [vmem:[#allocation2 + $0x38] sm:$0xff]
    %245 = vmatprep.subr.bf16.mxu0 0
    %246 = vmatpush1.bf16.msra.mxu0 %v236
    %247 = vmatprep.subr.bf16.mxu0 0
    %248 = vmatpush1.bf16.msra.mxu0 %v235
    %249 = vmatprep.subr.bf16.mxu0 0
    %250 = vmatpush1.bf16.msra.mxu0 %v234
    %251 = vmatprep.subr.bf16.mxu0 0
    %252 = vmatpush1.bf16.msra.mxu0 %v233
    %253 = vmatprep.subr.bf16.mxu0 0
    %254 = vmatpush1.bf16.msra.mxu0 %v232
    %255 = vmatprep.subr.bf16.mxu0 0
    %256 = vmatpush1.bf16.msra.mxu0 %v231
    %257 = vmatprep.subr.bf16.mxu0 0
    %258 = vmatpush1.bf16.msra.mxu0 %v230
    %259 = vmatprep.subr.bf16.mxu0 0
    %260 = vmatpush1.bf16.msra.mxu0 %v229
    %261 = vmatprep.subr.bf16.mxu0 0
    %262 = vmatpush2.bf16.msra.mxu0 0
    %263 = vmatprep.subr.bf16.mxu0 0
    %264 = vmatpush2.bf16.msra.mxu0 0
    %265 = vmatprep.subr.bf16.mxu0 0
    %266 = vmatpush2.bf16.msra.mxu0 0
    %267 = vmatprep.subr.bf16.mxu0 0
    %268 = vmatpush2.bf16.msra.mxu0 0
    %269 = vmatprep.subr.bf16.mxu0 0
    %270 = vmatpush2.bf16.msra.mxu0 0
    %271 = vmatprep.subr.bf16.mxu0 0
    %272 = vmatpush2.bf16.msra.mxu0 0
    %273 = vmatprep.subr.bf16.mxu0 0
    %274 = vmatpush2.bf16.msra.mxu0 0
    %275 = vmatprep.subr.bf16.mxu0 0
    %276 = vmatpush2.bf16.msra.mxu0 0
    %277 = vmatprep.mubr.bf16.mxu0 0
    %278 = vmatmul.mubr.bf16.gmra.mxu0 %v81
    %v279 = vpop.f32.mrf.mxu0
    %v280 = vadd.f32 0.0, %v279
    %v281 = vpop.f32.mrf.mxu0
    %v282 = vpop.f32.mrf.mxu0
    %v283 = vadd.f32 0.0, %v282
    %v284 = vpop.f32.mrf.mxu0
    %285 = vmatprep.mubr.bf16.mxu0 0
    %286 = vmatmul.mubr.bf16.gmra.mxu0 %v82
    %v287 = vpop.f32.mrf.mxu0
    %v288 = vadd.f32 0.0, %v287
    %v289 = vpop.f32.mrf.mxu0
    %v290 = vpop.f32.mrf.mxu0
    %v291 = vadd.f32 0.0, %v290
    %v292 = vpop.f32.mrf.mxu0
    %293 = vmatprep.mubr.bf16.mxu0 0
    %294 = vmatmul.mubr.bf16.gmra.mxu0 %v83
    %v295 = vpop.f32.mrf.mxu0
    %v296 = vadd.f32 0.0, %v295
    %v297 = vpop.f32.mrf.mxu0
    %v298 = vpop.f32.mrf.mxu0
    %v299 = vadd.f32 0.0, %v298
    %v300 = vpop.f32.mrf.mxu0
    %301 = vmatprep.mubr.bf16.mxu0 0
    %302 = vmatmul.mubr.bf16.gmra.mxu0 %v84
    %v303 = vpop.f32.mrf.mxu0
    %v304 = vadd.f32 0.0, %v303
    %v305 = vpop.f32.mrf.mxu0
    %v306 = vpop.f32.mrf.mxu0
    %v307 = vadd.f32 0.0, %v306
    %v308 = vpop.f32.mrf.mxu0
    %309 = vdwg.mxu0
    %v310 = vadd.f32 %v237, %v280
    %v311 = vadd.f32 %v238, %v283
    %v312 = vadd.f32 %v239, %v288
    %v313 = vadd.f32 %v240, %v291
    %v314 = vadd.f32 %v241, %v296
    %v315 = vadd.f32 %v242, %v299
    %v316 = vadd.f32 %v243, %v304
    %v317 = vadd.f32 %v244, %v307
    %318 = vst [vmem:[#allocation2] sm:$0xff] %v310
    %319 = vst [vmem:[#allocation2 + $0x8] sm:$0xff] %v311
    %320 = vst [vmem:[#allocation2 + $0x10] sm:$0xff] %v312
    %321 = vst [vmem:[#allocation2 + $0x18] sm:$0xff] %v313
    %322 = vst [vmem:[#allocation2 + $0x20] sm:$0xff] %v314
    %323 = vst [vmem:[#allocation2 + $0x28] sm:$0xff] %v315
    %324 = vst [vmem:[#allocation2 + $0x30] sm:$0xff] %v316
    %325 = vst [vmem:[#allocation2 + $0x38] sm:$0xff] %v317
    // Predicated region
    $region34: #{tpu_custom_call.1} parent=1 // pred_check
      %p326 = pneg %p55
    $region35: #{tpu_custom_call.1} parent=1 // pred_check_branch
      %328 = sbr.rel (%p326) target = $region37
    $region36: #{tpu_custom_call.1} parent=1 // pred_region
      %v329 = vld [vmem:[#allocation2] sm:$0xff]
      %v330 = vld [vmem:[#allocation2 + $0x8] sm:$0xff]
      %v331 = vld [vmem:[#allocation2 + $0x10] sm:$0xff]
      %v332 = vld [vmem:[#allocation2 + $0x18] sm:$0xff]
      %v333 = vld [vmem:[#allocation2 + $0x20] sm:$0xff]
      %v334 = vld [vmem:[#allocation2 + $0x28] sm:$0xff]
      %v335 = vld [vmem:[#allocation2 + $0x30] sm:$0xff]
      %v336 = vld [vmem:[#allocation2 + $0x38] sm:$0xff]
      %v337 = vld [vmem:[%s5] sm:$0xff]
      %v338 = vld [vmem:[%s5 + $0x8] sm:$0xff]
      %v339 = vld [vmem:[%s5 + $0x10] sm:$0xff]
      %v340 = vld [vmem:[%s5 + $0x18] sm:$0xff]
      %v341 = vld [vmem:[%s5 + $0x20] sm:$0xff]
      %v342 = vld [vmem:[%s5 + $0x28] sm:$0xff]
      %v343 = vld [vmem:[%s5 + $0x30] sm:$0xff]
      %v344 = vld [vmem:[%s5 + $0x38] sm:$0xff]
      %346 = vset.pattern.permute.xlu0 0
      %347 = vperm.xlu0 %346, %v337
      %v348 = vpop.permute.xlu0 %347
      %351 = vset.pattern.permute.xlu0 0
      %352 = vperm.xlu0 %351, %v338
      %v353 = vpop.permute.xlu0 %352
      %356 = vset.pattern.permute.xlu0 0
      %357 = vperm.xlu0 %356, %v339
      %v358 = vpop.permute.xlu0 %357
      %361 = vset.pattern.permute.xlu0 0
      %362 = vperm.xlu0 %361, %v340
      %v363 = vpop.permute.xlu0 %362
      %366 = vset.pattern.permute.xlu0 0
      %367 = vperm.xlu0 %366, %v341
      %v368 = vpop.permute.xlu0 %367
      %371 = vset.pattern.permute.xlu0 0
      %372 = vperm.xlu0 %371, %v342
      %v373 = vpop.permute.xlu0 %372
      %376 = vset.pattern.permute.xlu0 0
      %377 = vperm.xlu0 %376, %v343
      %v378 = vpop.permute.xlu0 %377
      %381 = vset.pattern.permute.xlu0 0
      %382 = vperm.xlu0 %381, %v344
      %v383 = vpop.permute.xlu0 %382
      %v385 = vmul.f32 %v329, %v348
      %v386 = vmul.f32 %v330, %v353
      %v387 = vmul.f32 %v331, %v358
      %v388 = vmul.f32 %v332, %v363
      %v389 = vmul.f32 %v333, %v368
      %v390 = vmul.f32 %v334, %v373
      %v391 = vmul.f32 %v335, %v378
      %v392 = vmul.f32 %v336, %v383
      %v393 = vpack.c.bf16 %v386, %v385
      %v394 = vpack.c.bf16 %v388, %v387
      %v395 = vpack.c.bf16 %v390, %v389
      %v396 = vpack.c.bf16 %v392, %v391
      %v397 = vld [vmem:[#allocation5] sm:$0xff]
      %v398 = vld [vmem:[#allocation5 + $0x8] sm:$0xff]
      %v399 = vld [vmem:[#allocation5 + $0x10] sm:$0xff]
      %v400 = vld [vmem:[#allocation5 + $0x18] sm:$0xff]
      %v401 = vld [vmem:[#allocation5 + $0x20] sm:$0xff]
      %v402 = vld [vmem:[#allocation5 + $0x28] sm:$0xff]
      %v403 = vld [vmem:[#allocation5 + $0x30] sm:$0xff]
      %v404 = vld [vmem:[#allocation5 + $0x38] sm:$0xff]
      %s405 = smul.u32 0, 16
      %s406 = smul.addr %s405, 4
      %s407 = scalar_lea.vmem %s4, %s406
      %v408 = vld [vmem:[%s407] sm:$0xf]
      %v409 = vld [vmem:[%s407 + $0x4] sm:$0xf]
      %v410 = vld [vmem:[%s407 + $0x8] sm:$0xf]
      %v411 = vld [vmem:[%s407 + $0xc] sm:$0xf]
      %v412 = vld [vmem:[%s407 + $0x10] sm:$0xf]
      %v413 = vld [vmem:[%s407 + $0x14] sm:$0xf]
      %v414 = vld [vmem:[%s407 + $0x18] sm:$0xf]
      %v415 = vld [vmem:[%s407 + $0x1c] sm:$0xf]
      %v416 = vld [vmem:[%s407 + $0x20] sm:$0xf]
      %v417 = vld [vmem:[%s407 + $0x24] sm:$0xf]
      %v418 = vld [vmem:[%s407 + $0x28] sm:$0xf]
      %v419 = vld [vmem:[%s407 + $0x2c] sm:$0xf]
      %v420 = vld [vmem:[%s407 + $0x30] sm:$0xf]
      %v421 = vld [vmem:[%s407 + $0x34] sm:$0xf]
      %v422 = vld [vmem:[%s407 + $0x38] sm:$0xf]
      %v423 = vld [vmem:[%s407 + $0x3c] sm:$0xf]
      %v440 = vunpack.c.l.b16 %v408
      %v441 = vunpack.c.l.b16 %v409
      %v442 = vunpack.c.l.b16 %v410
      %v443 = vunpack.c.l.b16 %v411
      %v444 = vunpack.c.l.b16 %v412
      %v445 = vunpack.c.l.b16 %v413
      %v446 = vunpack.c.l.b16 %v414
      %v447 = vunpack.c.l.b16 %v415
      %v448 = vunpack.c.l.b16 %v416
      %v449 = vunpack.c.l.b16 %v417
      %v450 = vunpack.c.l.b16 %v418
      %v451 = vunpack.c.l.b16 %v419
      %v452 = vunpack.c.l.b16 %v420
      %v453 = vunpack.c.l.b16 %v421
      %v454 = vunpack.c.l.b16 %v422
      %v455 = vunpack.c.l.b16 %v423
      %v456 = vpack.c.b16 %v441, %v440
      %v457 = vpack.c.b16 %v443, %v442
      %v458 = vpack.c.b16 %v445, %v444
      %v459 = vpack.c.b16 %v447, %v446
      %v460 = vpack.c.b16 %v449, %v448
      %v461 = vpack.c.b16 %v451, %v450
      %v462 = vpack.c.b16 %v453, %v452
      %v463 = vpack.c.b16 %v455, %v454
      %472 = vmatprep.subr.bf16.mxu0 0
      %473 = vmatpush1.bf16.msra.mxu0 %v463
      %474 = vmatprep.subr.bf16.mxu0 0
      %475 = vmatpush1.bf16.msra.mxu0 %v462
      %476 = vmatprep.subr.bf16.mxu0 0
      %477 = vmatpush1.bf16.msra.mxu0 %v461
      %478 = vmatprep.subr.bf16.mxu0 0
      %479 = vmatpush1.bf16.msra.mxu0 %v460
      %480 = vmatprep.subr.bf16.mxu0 0
      %481 = vmatpush1.bf16.msra.mxu0 %v459
      %482 = vmatprep.subr.bf16.mxu0 0
      %483 = vmatpush1.bf16.msra.mxu0 %v458
      %484 = vmatprep.subr.bf16.mxu0 0
      %485 = vmatpush1.bf16.msra.mxu0 %v457
      %486 = vmatprep.subr.bf16.mxu0 0
      %487 = vmatpush1.bf16.msra.mxu0 %v456
      %488 = vmatprep.subr.bf16.mxu0 0
      %489 = vmatpush2.bf16.msra.mxu0 0
      %490 = vmatprep.subr.bf16.mxu0 0
      %491 = vmatpush2.bf16.msra.mxu0 0
      %492 = vmatprep.subr.bf16.mxu0 0
      %493 = vmatpush2.bf16.msra.mxu0 0
      %494 = vmatprep.subr.bf16.mxu0 0
      %495 = vmatpush2.bf16.msra.mxu0 0
      %496 = vmatprep.subr.bf16.mxu0 0
      %497 = vmatpush2.bf16.msra.mxu0 0
      %498 = vmatprep.subr.bf16.mxu0 0
      %499 = vmatpush2.bf16.msra.mxu0 0
      %500 = vmatprep.subr.bf16.mxu0 0
      %501 = vmatpush2.bf16.msra.mxu0 0
      %502 = vmatprep.subr.bf16.mxu0 0
      %503 = vmatpush2.bf16.msra.mxu0 0
      %504 = vmatprep.mubr.bf16.mxu0 0
      %505 = vmatmul.mubr.bf16.gmra.mxu0 %v393
      %v506 = vpop.f32.mrf.mxu0
      %v507 = vadd.f32 0.0, %v506
      %v508 = vpop.f32.mrf.mxu0
      %v509 = vpop.f32.mrf.mxu0
      %v510 = vadd.f32 0.0, %v509
      %v511 = vpop.f32.mrf.mxu0
      %512 = vmatprep.mubr.bf16.mxu0 0
      %513 = vmatmul.mubr.bf16.gmra.mxu0 %v394
      %v514 = vpop.f32.mrf.mxu0
      %v515 = vadd.f32 0.0, %v514
      %v516 = vpop.f32.mrf.mxu0
      %v517 = vpop.f32.mrf.mxu0
      %v518 = vadd.f32 0.0, %v517
      %v519 = vpop.f32.mrf.mxu0
      %520 = vmatprep.mubr.bf16.mxu0 0
      %521 = vmatmul.mubr.bf16.gmra.mxu0 %v395
      %v522 = vpop.f32.mrf.mxu0
      %v523 = vadd.f32 0.0, %v522
      %v524 = vpop.f32.mrf.mxu0
      %v525 = vpop.f32.mrf.mxu0
      %v526 = vadd.f32 0.0, %v525
      %v527 = vpop.f32.mrf.mxu0
      %528 = vmatprep.mubr.bf16.mxu0 0
      %529 = vmatmul.mubr.bf16.gmra.mxu0 %v396
      %v530 = vpop.f32.mrf.mxu0
      %v531 = vadd.f32 0.0, %v530
      %v532 = vpop.f32.mrf.mxu0
      %v533 = vpop.f32.mrf.mxu0
      %v534 = vadd.f32 0.0, %v533
      %v535 = vpop.f32.mrf.mxu0
      %536 = vdwg.mxu0
      %v537 = vadd.f32 %v397, %v507
      %v538 = vadd.f32 %v398, %v510
      %v539 = vadd.f32 %v399, %v515
      %v540 = vadd.f32 %v400, %v518
      %v541 = vadd.f32 %v401, %v523
      %v542 = vadd.f32 %v402, %v526
      %v543 = vadd.f32 %v403, %v531
      %v544 = vadd.f32 %v404, %v534
      %545 = vst [vmem:[#allocation5] sm:$0xff] %v537
      %546 = vst [vmem:[#allocation5 + $0x8] sm:$0xff] %v538
      %547 = vst [vmem:[#allocation5 + $0x10] sm:$0xff] %v539
      %548 = vst [vmem:[#allocation5 + $0x18] sm:$0xff] %v540
      %549 = vst [vmem:[#allocation5 + $0x20] sm:$0xff] %v541
      %550 = vst [vmem:[#allocation5 + $0x28] sm:$0xff] %v542
      %551 = vst [vmem:[#allocation5 + $0x30] sm:$0xff] %v543
      %552 = vst [vmem:[#allocation5 + $0x38] sm:$0xff] %v544
    $region37: #{tpu_custom_call.1} parent=1 // pred_fallthru
      _
    // Predicated region
    $region38: #{tpu_custom_call.1} parent=1 // pred_check
      _
    $region39: #{tpu_custom_call.1} parent=1 // pred_check_branch
      %554 = sbr.rel (%p56) target = $region41
    $region40: #{tpu_custom_call.1} parent=1 // pred_region
      %v555 = vld [vmem:[#allocation5] sm:$0xff]
      %v556 = vld [vmem:[#allocation5 + $0x8] sm:$0xff]
      %v557 = vld [vmem:[#allocation5 + $0x10] sm:$0xff]
      %v558 = vld [vmem:[#allocation5 + $0x18] sm:$0xff]
      %v559 = vld [vmem:[#allocation5 + $0x20] sm:$0xff]
      %v560 = vld [vmem:[#allocation5 + $0x28] sm:$0xff]
      %v561 = vld [vmem:[#allocation5 + $0x30] sm:$0xff]
      %v562 = vld [vmem:[#allocation5 + $0x38] sm:$0xff]
      %v563 = vld [vmem:[%s6] sm:$0x1]
      %v565 = vlaneseq
      %v566 = vshrl.u32 %v565, 7
      %v567 = vsub.s32 0, %v566
      %v568 = vrot.slane %v563, %v567
      %v570 = vadd.f32 %v555, %v568
      %v571 = vadd.f32 %v556, %v568
      %v572 = vadd.f32 %v557, %v568
      %v573 = vadd.f32 %v558, %v568
      %v574 = vadd.f32 %v559, %v568
      %v575 = vadd.f32 %v560, %v568
      %v576 = vadd.f32 %v561, %v568
      %v577 = vadd.f32 %v562, %v568
      %v578 = vmax.f32 %v570, 0.0
      %v579 = vmax.f32 %v571, 0.0
      %v580 = vmax.f32 %v572, 0.0
      %v581 = vmax.f32 %v573, 0.0
      %v582 = vmax.f32 %v574, 0.0
      %v583 = vmax.f32 %v575, 0.0
      %v584 = vmax.f32 %v576, 0.0
      %v585 = vmax.f32 %v577, 0.0
      %586 = vst [vmem:[#allocation5] sm:$0xff] %v578
      %587 = vst [vmem:[#allocation5 + $0x8] sm:$0xff] %v579
      %588 = vst [vmem:[#allocation5 + $0x10] sm:$0xff] %v580
      %589 = vst [vmem:[#allocation5 + $0x18] sm:$0xff] %v581
      %590 = vst [vmem:[#allocation5 + $0x20] sm:$0xff] %v582
      %591 = vst [vmem:[#allocation5 + $0x28] sm:$0xff] %v583
      %592 = vst [vmem:[#allocation5 + $0x30] sm:$0xff] %v584
      %593 = vst [vmem:[#allocation5 + $0x38] sm:$0xff] %v585
    $region41: #{tpu_custom_call.1} parent=1 // pred_fallthru
      _
    // Predicated region
    $region42: #{tpu_custom_call.1} parent=1 // pred_check
      _
    $region43: #{tpu_custom_call.1} parent=1 // pred_check_branch
      %595 = sbr.rel (0) target = $region45
    $region44: #{tpu_custom_call.1} parent=1 // pred_region
      %s597 = ssub.s32 1024, 1024
      %598 = vsyncadd [#allocation6], %s597
      %s599 = sshll.u32 [#allocation5], 4
      %s600 = int_to_ptr.vmem [resolvable:$true] %s599
      %605 = dma.vmem_to_hbm [thread:$0]  %s600, 1024, %s7, [#allocation6], 128, 128, 8
    $region45: #{tpu_custom_call.1} parent=1 // pred_fallthru
      _
    // Predicated region
    $region46: #{tpu_custom_call.1} parent=1 // pred_check
      _
    $region47: #{tpu_custom_call.1} parent=1 // pred_check_branch
      %607 = sbr.rel (0) target = $region49
    $region48: #{tpu_custom_call.1} parent=1 // pred_region
      %608 = dma.done [#allocation6], 1024
    $region49: #{tpu_custom_call.1} parent=1 // pred_fallthru
      _
    %609 = vsyncpa [#allocation6], 1

</llo_original>
